<compile_context>
chip_gen: v5e
topology: v5e:2x2
jax: 0.10.0
libtpu: 0.0.40
codegen_flags: <defaults>
</compile_context>

<pallas_src>
import functools
import math

import jax
import jax.numpy as jnp
from jax.experimental import pallas as pl
from jax.experimental.pallas import tpu as pltpu


def _label_smoothing_kl_kernel(pred_ref, tgt_ref, out_ref, *,
                               n_total, classes, off, confidence, h_const):
    pid = pl.program_id(0)

    pred = pred_ref[...].astype(jnp.float32)            # (TILE_N, C)
    tgt = tgt_ref[...]                                   # (TILE_N, 1) int32
    tn, c = pred.shape                                   # static

    # ---- log-softmax building blocks (only exp touches the full tile on the EUP) ----
    m = jnp.max(pred, axis=-1, keepdims=True)            # (TILE_N, 1)
    sumexp = jnp.sum(jnp.exp(pred - m), axis=-1, keepdims=True)
    norm = m + jnp.log(sumexp)                            # (TILE_N, 1): max + lse

    # sum over classes of logp = sum(pred) - C * norm
    sum_pred = jnp.sum(pred, axis=-1, keepdims=True)
    sum_logp = sum_pred - jnp.float32(c) * norm           # (TILE_N, 1)

    # pred[target] via a single iota + compare + select + row reduce
    lane = jax.lax.broadcasted_iota(jnp.int32, (tn, c), 1)
    pred_tgt = jnp.sum(jnp.where(lane == tgt, pred, 0.0), axis=-1, keepdims=True)
    logp_tgt = pred_tgt - norm                            # (TILE_N, 1)

    # per-row KL contribution (true_dist never materialized)
    row_loss = (jnp.float32(h_const)
                - jnp.float32(off) * sum_logp
                - jnp.float32(confidence - off) * logp_tgt)   # (TILE_N, 1)

    # mask padded rows (global row index >= n_total)
    row_idx = pid * tn + jax.lax.broadcasted_iota(jnp.int32, (tn, 1), 0)
    valid = (row_idx < n_total).astype(jnp.float32)
    tile_sum = jnp.sum(row_loss * valid)

    # ---- resident SMEM scalar accumulator across the grid ----
    @pl.when(pid == 0)
    def _():
        out_ref[0, 0] = 0.0

    out_ref[0, 0] = out_ref[0, 0] + tile_sum

    @pl.when(pid == pl.num_programs(0) - 1)
    def _():
        # KLDivLoss(reduction='mean'): divide by the GLOBAL element count N*C.
        out_ref[0, 0] = out_ref[0, 0] * jnp.float32(1.0 / (n_total * classes))


def _round_up(x, m):
    return (x + m - 1) // m * m


def label_smoothing_loss(pred, target, *, classes, smoothing=0.0, block_rows=256):
    """pred: (N, C) float (f32 or bf16), target: (N,) int. Returns scalar f32 loss."""
    n, c = pred.shape
    assert c == classes

    # trace-time constants (handle smoothing == 0 and confidence == 0 cleanly)
    confidence = 1.0 - smoothing
    off = smoothing / (classes - 1) if classes > 1 else 0.0
    h_const = 0.0
    if confidence > 0.0:
        h_const += confidence * math.log(confidence)
    if off > 0.0:
        h_const += (classes - 1) * off * math.log(off)

    # row tile: multiple of 8 sublanes, capped by block_rows; pad N up to a multiple
    tile_n = _round_up(min(block_rows, _round_up(n, 8)), 8)
    n_pad = _round_up(n, tile_n)
    if n_pad != n:
        pred = jnp.pad(pred, ((0, n_pad - n), (0, 0)))
        target = jnp.pad(target, ((0, n_pad - n),))
    tgt2d = target.astype(jnp.int32).reshape(n_pad, 1)

    grid = (n_pad // tile_n,)

    # Rough VMEM budget: double-buffered pred tile + in-kernel temps.
    tile_bytes = tile_n * c * 4
    vmem_limit = int(min(64 * 1024 * 1024, max(16 * 1024 * 1024, 6 * tile_bytes)))

    kernel = functools.partial(
        _label_smoothing_kl_kernel,
        n_total=n, classes=classes, off=off, confidence=confidence, h_const=h_const,
    )

    out = pl.pallas_call(
        kernel,
        out_shape=jax.ShapeDtypeStruct((1, 1), jnp.float32),
        grid=grid,
        in_specs=[
            pl.BlockSpec((tile_n, c), lambda i: (i, 0)),     # pred row tile (VMEM)
            pl.BlockSpec((tile_n, 1), lambda i: (i, 0)),     # target row tile (VMEM)
        ],
        out_specs=pl.BlockSpec(memory_space=pltpu.SMEM),     # resident scalar accumulator
        compiler_params=pltpu.CompilerParams(
            dimension_semantics=("arbitrary",),              # reduction axis
            vmem_limit_bytes=vmem_limit,
        ),
    )(pred, tgt2d)
    return out[0, 0]


def _reference(pred, target, classes, smoothing):
    # pure-JAX reference matching nn.KLDivLoss()(log_softmax(pred), true_dist)
    logp = jax.nn.log_softmax(pred.astype(jnp.float32), axis=-1)
    off = smoothing / (classes - 1) if classes > 1 else 0.0
    true_dist = jnp.full_like(logp, off)
    true_dist = true_dist.at[jnp.arange(pred.shape[0]), target].set(1.0 - smoothing)
    log_t = jnp.where(true_dist > 0, jnp.log(jnp.where(true_dist > 0, true_dist, 1.0)), 0.0)
    kl = jnp.where(true_dist > 0, true_dist * (log_t - logp), 0.0)
    return jnp.mean(kl)


if __name__ == "__main__":
    key = jax.random.PRNGKey(0)
    k1, k2, k3, k4 = jax.random.split(key, 4)

    # Case 1: small single-tile case (matches the module's typical toy shape).
    N1, C1, S1 = 8, 32, 0.1
    pred1 = jax.random.normal(k1, (N1, C1), dtype=jnp.float32)
    tgt1 = jax.random.randint(k2, (N1,), 0, C1, dtype=jnp.int32)
    loss1 = jax.block_until_ready(
        label_smoothing_loss(pred1, tgt1, classes=C1, smoothing=S1))
    ref1 = _reference(pred1, tgt1, C1, S1)
    assert jnp.allclose(loss1, ref1, rtol=1e-5, atol=1e-5), (loss1, ref1)

    # Case 2: multi-tile grid with row padding + smoothing == 0 edge case.
    N2, C2, S2 = 20, 128, 0.0
    pred2 = jax.random.normal(k3, (N2, C2), dtype=jnp.float32)
    tgt2 = jax.random.randint(k4, (N2,), 0, C2, dtype=jnp.int32)
    loss2 = jax.block_until_ready(
        label_smoothing_loss(pred2, tgt2, classes=C2, smoothing=S2, block_rows=8))
    ref2 = _reference(pred2, tgt2, C2, S2)
    assert jnp.allclose(loss2, ref2, rtol=1e-5, atol=1e-5), (loss2, ref2)

    print("KERNEL_OK")
</pallas_src>

<mosaic_0001>
module attributes {stable_mosaic.version = 11 : i64} {
  func.func @_label_smoothing_kl_kernel(%arg0: i32, %arg1: memref<8x32xf32, #tpu.memory_space<vmem>>, %arg2: memref<8x1xi32, #tpu.memory_space<vmem>>, %arg3: memref<1x1xf32, #tpu.memory_space<smem>>) attributes {dimension_semantics = [#tpu.dimension_semantics<arbitrary>], iteration_bounds = array<i64: 1>, scalar_prefetch = 0 : i64, scratch_operands = 0 : i64, tpu.core_type = #tpu.core_type<tc>, window_params = [{transform_indices = @transform_0, window_bounds = array<i64: 8, 32>}, {transform_indices = @transform_1, window_bounds = array<i64: 8, 1>}, {transform_indices = @transform_2, window_bounds = array<i64: 1, 1>}]} {
    %c0 = arith.constant 0 : index
    %c0_0 = arith.constant 0 : index
    %0 = vector.load %arg1[%c0, %c0_0] : memref<8x32xf32, #tpu.memory_space<vmem>>, vector<8x32xf32>
    %c0_1 = arith.constant 0 : index
    %c0_2 = arith.constant 0 : index
    %1 = vector.load %arg2[%c0_1, %c0_2] : memref<8x1xi32, #tpu.memory_space<vmem>>, vector<8x1xi32>
    %cst = arith.constant dense<0xFF800000> : vector<8xf32>
    %2 = vector.multi_reduction <maximumf>, %0, %cst [1] : vector<8x32xf32> to vector<8xf32>
    %3 = vector.shape_cast %2 : vector<8xf32> to vector<8x1xf32>
    %4 = vector.broadcast %3 : vector<8x1xf32> to vector<8x32xf32>
    %5 = arith.subf %0, %4 : vector<8x32xf32>
    %6 = math.exp %5 : vector<8x32xf32>
    %cst_3 = arith.constant dense<0.000000e+00> : vector<8xf32>
    %7 = vector.multi_reduction <add>, %6, %cst_3 [1] : vector<8x32xf32> to vector<8xf32>
    %8 = vector.shape_cast %7 : vector<8xf32> to vector<8x1xf32>
    %9 = math.log %8 : vector<8x1xf32>
    %10 = arith.addf %3, %9 : vector<8x1xf32>
    %cst_4 = arith.constant dense<0.000000e+00> : vector<8xf32>
    %11 = vector.multi_reduction <add>, %0, %cst_4 [1] : vector<8x32xf32> to vector<8xf32>
    %12 = vector.shape_cast %11 : vector<8xf32> to vector<8x1xf32>
    %cst_5 = arith.constant 3.200000e+01 : f32
    %13 = vector.broadcast %cst_5 : f32 to vector<8x1xf32>
    %14 = arith.mulf %13, %10 : vector<8x1xf32>
    %15 = arith.subf %12, %14 : vector<8x1xf32>
    %16 = tpu.iota {dimensions = array<i32: 1>} : vector<8x32xi32>
    %17 = vector.broadcast %1 : vector<8x1xi32> to vector<8x32xi32>
    %18 = arith.cmpi eq, %16, %17 : vector<8x32xi32>
    %cst_6 = arith.constant 0.000000e+00 : f32
    %19 = vector.broadcast %cst_6 : f32 to vector<8x32xf32>
    %20 = arith.select %18, %0, %19 : vector<8x32xi1>, vector<8x32xf32>
    %cst_7 = arith.constant dense<0.000000e+00> : vector<8xf32>
    %21 = vector.multi_reduction <add>, %20, %cst_7 [1] : vector<8x32xf32> to vector<8xf32>
    %22 = vector.shape_cast %21 : vector<8xf32> to vector<8x1xf32>
    %23 = arith.subf %22, %10 : vector<8x1xf32>
    %cst_8 = arith.constant 0.0032258064 : f32
    %24 = vector.broadcast %cst_8 : f32 to vector<8x1xf32>
    %25 = arith.mulf %24, %15 : vector<8x1xf32>
    %cst_9 = arith.constant -0.668481708 : f32
    %26 = vector.broadcast %cst_9 : f32 to vector<8x1xf32>
    %27 = arith.subf %26, %25 : vector<8x1xf32>
    %cst_10 = arith.constant 0.896774172 : f32
    %28 = vector.broadcast %cst_10 : f32 to vector<8x1xf32>
    %29 = arith.mulf %28, %23 : vector<8x1xf32>
    %30 = arith.subf %27, %29 : vector<8x1xf32>
    %c8_i32 = arith.constant 8 : i32
    %31 = arith.muli %arg0, %c8_i32 : i32
    %32 = tpu.iota {dimensions = array<i32: 0>} : vector<8x1xi32>
    %33 = vector.broadcast %31 : i32 to vector<8x1xi32>
    %34 = arith.addi %33, %32 : vector<8x1xi32>
    %c8_i32_11 = arith.constant 8 : i32
    %35 = vector.broadcast %c8_i32_11 : i32 to vector<8x1xi32>
    %36 = arith.cmpi slt, %34, %35 : vector<8x1xi32>
    %37 = arith.extui %36 : vector<8x1xi1> to vector<8x1xi32>
    %38 = arith.sitofp %37 : vector<8x1xi32> to vector<8x1xf32>
    %39 = arith.mulf %30, %38 : vector<8x1xf32>
    %40 = vector.shape_cast %39 : vector<8x1xf32> to vector<1x8x1xf32>
    %cst_12 = arith.constant dense<0.000000e+00> : vector<1xf32>
    %41 = vector.multi_reduction <add>, %40, %cst_12 [1, 2] : vector<1x8x1xf32> to vector<1xf32>
    %42 = vector.shape_cast %41 : vector<1xf32> to vector<1x1x1xf32>
    %43 = vector.extract %42[0, 0, 0] : f32 from vector<1x1x1xf32>
    %c0_i32 = arith.constant 0 : i32
    %44 = arith.cmpi eq, %arg0, %c0_i32 : i32
    %45 = arith.extui %44 : i1 to i32
    %c0_i32_13 = arith.constant 0 : i32
    %46 = arith.cmpi ne, %45, %c0_i32_13 : i32
    scf.if %46 {
      %cst_20 = arith.constant 0.000000e+00 : f32
      %c0_21 = arith.constant 0 : index
      %c0_22 = arith.constant 0 : index
      %53 = memref.load %arg3[%c0_21, %c0_22] : memref<1x1xf32, #tpu.memory_space<smem>>
      memref.store %cst_20, %arg3[%c0_21, %c0_22] : memref<1x1xf32, #tpu.memory_space<smem>>
    } else {
    }
    %c0_14 = arith.constant 0 : index
    %c0_15 = arith.constant 0 : index
    %47 = memref.load %arg3[%c0_14, %c0_15] : memref<1x1xf32, #tpu.memory_space<smem>>
    %48 = arith.addf %47, %43 : f32
    %c0_16 = arith.constant 0 : index
    %c0_17 = arith.constant 0 : index
    %49 = memref.load %arg3[%c0_16, %c0_17] : memref<1x1xf32, #tpu.memory_space<smem>>
    memref.store %48, %arg3[%c0_16, %c0_17] : memref<1x1xf32, #tpu.memory_space<smem>>
    %c0_i32_18 = arith.constant 0 : i32
    %50 = arith.cmpi eq, %arg0, %c0_i32_18 : i32
    %51 = arith.extui %50 : i1 to i32
    %c0_i32_19 = arith.constant 0 : i32
    %52 = arith.cmpi ne, %51, %c0_i32_19 : i32
    scf.if %52 {
      %c0_20 = arith.constant 0 : index
      %c0_21 = arith.constant 0 : index
      %53 = memref.load %arg3[%c0_20, %c0_21] : memref<1x1xf32, #tpu.memory_space<smem>>
      %cst_22 = arith.constant 3.906250e-03 : f32
      %54 = arith.mulf %53, %cst_22 : f32
      %c0_23 = arith.constant 0 : index
      %c0_24 = arith.constant 0 : index
      %55 = memref.load %arg3[%c0_23, %c0_24] : memref<1x1xf32, #tpu.memory_space<smem>>
      memref.store %54, %arg3[%c0_23, %c0_24] : memref<1x1xf32, #tpu.memory_space<smem>>
    } else {
    }
    return
  }
  func.func @transform_0(%arg0: i32) -> (i32, i32) {
    %c0_i32 = arith.constant 0 : i32
    %c0_i32_0 = arith.constant 0 : i32
    return %arg0, %c0_i32 : i32, i32
  }
  func.func @transform_1(%arg0: i32) -> (i32, i32) {
    %c0_i32 = arith.constant 0 : i32
    %c0_i32_0 = arith.constant 0 : i32
    return %arg0, %c0_i32 : i32, i32
  }
  func.func @transform_2(%arg0: i32) -> (i32, i32) {
    %c0_i32 = arith.constant 0 : i32
    %c0_i32_0 = arith.constant 0 : i32
    %c0_i32_1 = arith.constant 0 : i32
    return %c0_i32, %c0_i32_0 : i32, i32
  }
}

</mosaic_0001>

<llo_original>
// kernel: tpu_custom_call.1
$region0: #{tpu_custom_call.1}
  #allocation0 [shape = 'u32[]', space=smem, size = 0x4, offset = 0x4, fixed_abs, tag = 'smem constant byte address 0x4 - core index']
  #allocation1 [shape = 'u32[72,128]{1,0:T(1,128)}', space=vmem, size = 0x9000, scoped, tag = 'internal scratch']
  %s0 = inlined_call_operand.vmem [shape: f32[8,32], index: 0, kind: input, shape index: {}]
  %s1 = inlined_call_operand.vmem [shape: s32[8,1], index: 1, kind: input, shape index: {}]
  %s2 = inlined_call_operand.hbm [shape: f32[1,1], index: 2, kind: output, shape index: {}]
  %s3 = sld [smem:[#allocation0]]
  $region26: #{tpu_custom_call.1} parent=0
    _
  %s5 = ssub.s32 1, %s3
  %s6 = scalar_select 0, %s5, %s3
  $region1: #{tpu_custom_call.1} parent=0
    #allocation2 [shape = 'u8[512]{0}', space=smem, size = 0x200, scoped, tag = 'output window, operand 0, single buffered']
    #allocation3 [shape = 's32[1]{0}', space=sflag, size = 0x4, scoped, tag = 'scoped memory for tpu_custom_call.1']
    %7 = vsyncpa [#allocation3], 0
    // Predicated region
    $region2: #{tpu_custom_call.1} parent=1 // pred_check
      _
    $region3: #{tpu_custom_call.1} parent=1 // pred_check_branch
      %9 = sbr.rel (0) target = $region5
    $region4: #{tpu_custom_call.1} parent=1 // pred_region
      _
    $region5: #{tpu_custom_call.1} parent=1 // pred_fallthru
      _
    // Predicated region
    $region6: #{tpu_custom_call.1} parent=1 // pred_check
      _
    $region7: #{tpu_custom_call.1} parent=1 // pred_check_branch
      %11 = sbr.rel (0) target = $region9
    $region8: #{tpu_custom_call.1} parent=1 // pred_region
      _
    $region9: #{tpu_custom_call.1} parent=1 // pred_fallthru
      _
    %v12 = vld [vmem:[%s0] sm:$0xff]
    %v13 = vld [vmem:[%s1] sm:$0xff]
    %vm14 = vcmask 261120
    %v15 = vsel %vm14, %v12, -inf
    %16 = vmax.xlane.f32.xlu0 %v15
    %v17 = vpop.xlane.xlu0 %16
    %v18 = vsub.f32 %v12, %v17
    %v19 = vmul.f32 %v18, 1.442695
    %v20 = vpow.pop %v19
    %v21 = vsel %vm14, %v20, 0.0
    %22 = vadd.xlane.f32.xlu0 %v21
    %v23 = vpop.xlane.xlu0 %22
    %v24 = vlog2.pop %v23
    %v25 = vmul.f32 %v24, 0.6931472
    %v26 = vadd.f32 %v17, %v25
    %v27 = vsel %vm14, %v12, 0.0
    %28 = vadd.xlane.f32.xlu0 %v27
    %v29 = vpop.xlane.xlu0 %28
    %v30 = vmul.f32 %v26, 32.0
    %v31 = vsub.f32 %v29, %v30
    %v32 = vlaneseq
    %v33 = vand.u32 %v32, 127
    %34 = vset.pattern.permute.xlu0 0
    %35 = vperm.xlu0 %34, %v13
    %v36 = vpop.permute.xlu0 %35
    %vm37 = vcmp.eq.s32.totalorder %v33, %v36
    %v38 = vsel %vm37, %v12, 0.0
    %v39 = vsel %vm14, %v38, 0.0
    %40 = vadd.xlane.f32.xlu0 %v39
    %v41 = vpop.xlane.xlu0 %40
    %v42 = vsub.f32 %v41, %v26
    %v43 = vmul.f32 %v31, 0.0032258064
    %v44 = vsub.f32 -0.6684817, %v43
    %v45 = vmul.f32 %v42, 0.8967742
    %v46 = vsub.f32 %v44, %v45
    %s47 = smul.u32 0, 8
    %v48 = vlaneseq
    %v49 = vshrl.u32 %v48, 7
    %v50 = vstv %s47
    %v51 = vadd.s32 %v50, %v49
    %vm52 = vcmp.lt.s32.totalorder %v51, 8
    %v53 = vsel %vm52, 1, 0
    %v54 = vcvt.s32.f32 %v53
    %v55 = vmul.f32 %v46, %v54
    %vm56 = vcmask 7168
    %v57 = vsel %vm56, %v55, 0.0
    %58 = vadd.xlane.f32.xlu0 %v57
    %v59 = vpop.xlane.xlu0 %58
    %v60 = vrot.slane %v59, 4
    %v61 = vadd.f32 %v59, %v60
    %v62 = vrot.slane %v61, 2
    %v63 = vadd.f32 %v61, %v62
    %v64 = vrot.slane %v63, 1
    %v65 = vadd.f32 %v63, %v64
    %s66 = vtos %v65
    %p67 = scmp.eq.s32.totalorder 0, 0
    // Predicated region
    $region10: #{tpu_custom_call.1} parent=1 // pred_check
      %p68 = pneg %p67
    $region11: #{tpu_custom_call.1} parent=1 // pred_check_branch
      %70 = sbr.rel (%p68) target = $region13
    $region12: #{tpu_custom_call.1} parent=1 // pred_region
      %s71 = scalar_lea.smem [#allocation2], 0
      %72 = sst [smem:[%s71]] 0.0
    $region13: #{tpu_custom_call.1} parent=1 // pred_fallthru
      _
    %s73 = sld [smem:[#allocation2]]
    %s74 = sadd.f32 %s73, %s66
    %s75 = scalar_lea.smem [#allocation2], 0
    %76 = sst [smem:[%s75]] %s74
    // Predicated region
    $region14: #{tpu_custom_call.1} parent=1 // pred_check
      %p77 = pneg %p67
    $region15: #{tpu_custom_call.1} parent=1 // pred_check_branch
      %79 = sbr.rel (%p77) target = $region17
    $region16: #{tpu_custom_call.1} parent=1 // pred_region
      %s80 = sld [smem:[#allocation2]]
      %s81 = smul.f32 %s80, 0.00390625
      %82 = sst [smem:[%s75]] %s81
    $region17: #{tpu_custom_call.1} parent=1 // pred_fallthru
      _
    // Predicated region
    $region18: #{tpu_custom_call.1} parent=1 // pred_check
      _
    $region19: #{tpu_custom_call.1} parent=1 // pred_check_branch
      %84 = sbr.rel (0) target = $region21
    $region20: #{tpu_custom_call.1} parent=1 // pred_region
      %86 = vsyncadd [#allocation3], 0
      %s88 = sshll.u32 %s2, 4
      %s89 = int_to_ptr.hbm [resolvable:$true] %s88
      %91 = dma.smem_to_hbm [#allocation2], 16, %s89, [#allocation3]
    $region21: #{tpu_custom_call.1} parent=1 // pred_fallthru
      _
    // Predicated region
    $region22: #{tpu_custom_call.1} parent=1 // pred_check
      _
    $region23: #{tpu_custom_call.1} parent=1 // pred_check_branch
      %93 = sbr.rel (0) target = $region25
    $region24: #{tpu_custom_call.1} parent=1 // pred_region
      %95 = dma.done [#allocation3], 16
    $region25: #{tpu_custom_call.1} parent=1 // pred_fallthru
      _
    %96 = sfence
    %97 = vsyncpa [#allocation3], 1

</llo_original>
